<compile_context>
chip_gen: v7x
topology: tpu7x:2x2x1
jax: 0.10.0
libtpu: 0.0.40
codegen_flags: <defaults>
</compile_context>

<pallas_src>
import functools

import jax
import jax.numpy as jnp
from jax.experimental import pallas as pl
from jax.experimental.pallas import tpu as pltpu


_LANE = 128          # TPU lane width
_SUBLANE = 8         # f32 sublanes per vreg
_MAX_TILE_B = 512    # max batch rows per factored grid step
_XLA_FAST_PATH_WORK = 32768   # roughly one MXU pass; below this plain XLA wins


def _round_up(v, mult):
    return ((v + mult - 1) // mult) * mult


@functools.lru_cache(maxsize=1)
def _vmem_budget_and_cap():
    """(soft VMEM budget for tile sizing, hard cap for vmem_limit_bytes)."""
    capacity = 64 << 20                      # conservative default (v7x per-TC VMEM)
    try:
        capacity = int(pltpu.get_tpu_info().vmem_capacity_bytes)
    except Exception:
        pass
    budget = min(int(0.45 * capacity), 56 << 20)   # ~28 MiB on v7x, ~56 MiB on v5e/v6e
    cap = int(0.90 * capacity)
    return budget, cap


# ---------------------------------------------------------------------------
# Kernels
# ---------------------------------------------------------------------------
def _lowrank_factored_kernel(x_ref, wa_ref, wb_ref, ba_ref, bb_ref, y_ref, *,
                             mn_pad, r):
    """Factored path, one batch tile per grid step.

    x_ref  : (TILE_B, i)           activations (weight dtype, e.g. bf16)
    wa_ref : (i, r*mn_pad)         rank-expanded A; col k*mn_pad + p*n + q = wa[p*r+k]
    wb_ref : (i, r*mn_pad)         rank-expanded B; col k*mn_pad + p*n + q = wb[k*n+q]
    ba_ref : (1, r*mn_pad) f32     matching biases (f32, added post-MXU)
    bb_ref : (1, r*mn_pad) f32
    y_ref  : (TILE_B, mn_pad) f32  flat output y[b, p*n + q]
    """
    x = x_ref[...]
    a = jnp.dot(x, wa_ref[...], preferred_element_type=jnp.float32) + ba_ref[...]
    b = jnp.dot(x, wb_ref[...], preferred_element_type=jnp.float32) + bb_ref[...]
    prod = a * b                         # full-width VPU: every lane of every vreg busy
    acc = prod[:, :mn_pad]
    for k in range(1, r):                # r < min(m, n): a handful of full-slab adds
        acc = acc + prod[:, k * mn_pad:(k + 1) * mn_pad]
    y_ref[...] = acc.astype(y_ref.dtype)   # single lane-dense, unmasked store


def _lowrank_full_kernel(x_ref, wm_ref, bm_ref, y_ref):
    """Full-rank path, one output-column tile per grid step.

    x_ref : (B, i) resident; wm_ref: (i, tile_n) streamed; bm_ref: (1, mn_pad) resident.
    """
    tile_n = y_ref.shape[1]
    start = pl.multiple_of(pl.program_id(0) * tile_n, tile_n)
    acc = jnp.dot(x_ref[...], wm_ref[...], preferred_element_type=jnp.float32)
    y_ref[...] = (acc + bm_ref[:, pl.ds(start, tile_n)]).astype(y_ref.dtype)


# ---------------------------------------------------------------------------
# jit-wrapped forwards (shapes/config static, weights traced)
# ---------------------------------------------------------------------------
@functools.partial(jax.jit, static_argnames=("m", "n", "r"))
def _factored_forward(x2, wa_exp, wb_exp, ba_exp, bb_exp, *, m, n, r):
    B, i = x2.shape
    mn_pad = wa_exp.shape[1] // r
    wbytes = jnp.dtype(wa_exp.dtype).itemsize
    budget, cap = _vmem_budget_and_cap()

    # Resident weights + per-batch-row working set -> largest batch tile that fits.
    weight_bytes = 2 * i * r * mn_pad * wbytes + 2 * r * mn_pad * 4
    per_row = (2 * i * wbytes          # double-buffered x row
               + 2 * mn_pad * 4        # double-buffered output row
               + 3 * r * mn_pad * 4)   # a/b/prod f32 temporaries
    avail = budget - weight_bytes - (2 << 20)
    rows = max(avail // per_row, _SUBLANE) if avail > 0 else _SUBLANE
    tile_b = int(min(max((rows // _SUBLANE) * _SUBLANE, _SUBLANE), _MAX_TILE_B))

    B8 = max(_round_up(B, _SUBLANE), _SUBLANE)
    tile_b = min(tile_b, B8)
    B_pad = _round_up(B8, tile_b)
    x_pad = jnp.pad(x2, ((0, B_pad - B), (0, 0))).astype(wa_exp.dtype)

    vmem_limit = int(min(max(2 * weight_bytes + tile_b * per_row + (4 << 20),
                             16 << 20), cap))

    vmem = pltpu.MemorySpace.VMEM
    y_flat = pl.pallas_call(
        functools.partial(_lowrank_factored_kernel, mn_pad=mn_pad, r=r),
        out_shape=jax.ShapeDtypeStruct((B_pad, mn_pad), jnp.float32),
        grid=(B_pad // tile_b,),
        in_specs=[
            pl.BlockSpec((tile_b, i), lambda b: (b, 0)),   # streamed activations
            pl.BlockSpec(memory_space=vmem),               # resident expanded A weights
            pl.BlockSpec(memory_space=vmem),               # resident expanded B weights
            pl.BlockSpec(memory_space=vmem),               # resident A bias (f32)
            pl.BlockSpec(memory_space=vmem),               # resident B bias (f32)
        ],
        out_specs=pl.BlockSpec((tile_b, mn_pad), lambda b: (b, 0)),
        compiler_params=pltpu.CompilerParams(
            dimension_semantics=("parallel",),             # batch tiles -> both TCs on v7x
            vmem_limit_bytes=vmem_limit,
        ),
    )(x_pad, wa_exp, wb_exp, ba_exp, bb_exp)
    return y_flat[:B, : m * n].reshape(B, m, n)


@functools.partial(jax.jit, static_argnames=("m", "n", "tile_n", "n_buf"))
def _full_forward(x2, wm_t_pad, bm_pad, *, m, n, tile_n, n_buf):
    B, i = x2.shape
    mn_pad = wm_t_pad.shape[1]
    wbytes = jnp.dtype(wm_t_pad.dtype).itemsize
    _, cap = _vmem_budget_and_cap()

    B_pad = max(_round_up(B, _SUBLANE), _SUBLANE)
    x_pad = jnp.pad(x2, ((0, B_pad - B), (0, 0))).astype(wm_t_pad.dtype)

    need = (n_buf * i * tile_n * wbytes      # streamed weight buffers
            + B_pad * i * wbytes             # resident activations
            + mn_pad * 4                     # resident bias
            + 2 * B_pad * tile_n * 4)        # double-buffered output tile
    vmem_limit = int(min(max(2 * need + (4 << 20), 16 << 20), cap))

    if n_buf > 2:
        # Deeper weight-stream pipeline (v7x: tiny per-tile MXU work, fast HBM).
        w_spec = pl.BlockSpec((i, tile_n), lambda j: (0, j),
                              pipeline_mode=pl.Buffered(n_buf))
    else:
        w_spec = pl.BlockSpec((i, tile_n), lambda j: (0, j))

    vmem = pltpu.MemorySpace.VMEM
    y_pad = pl.pallas_call(
        _lowrank_full_kernel,
        out_shape=jax.ShapeDtypeStruct((B_pad, mn_pad), jnp.float32),
        grid=(mn_pad // tile_n,),
        in_specs=[
            pl.BlockSpec(memory_space=vmem),   # x resident (no per-step DMA)
            w_spec,                            # streamed weight column tiles
            pl.BlockSpec(memory_space=vmem),   # bias resident; sliced in-kernel
        ],
        out_specs=pl.BlockSpec((B_pad, tile_n), lambda j: (0, j)),
        compiler_params=pltpu.CompilerParams(
            dimension_semantics=("parallel",),
            vmem_limit_bytes=vmem_limit,
        ),
    )(x_pad, wm_t_pad, bm_pad)
    return y_pad[:B, : m * n].reshape(B, m, n)


# ---------------------------------------------------------------------------
# Module wrapper (parameter setup + layout glue in plain JAX)
# ---------------------------------------------------------------------------
class LowRankPallas:
    """Outputs a rank-R matrix of size m x n from an input of size i."""

    def __init__(self, key, i, m, n, r, weight_dtype=jnp.bfloat16,
                 small_fast_path=True):
        self.i, self.m, self.n = i, m, n
        self.weight_dtype = weight_dtype
        self.small_fast_path = small_fast_path
        max_rank = min(m, n)
        if r is None:
            r = max_rank
        self.factored = r < max_rank
        self.r = r

        budget, _ = _vmem_budget_and_cap()
        wbytes = jnp.dtype(weight_dtype).itemsize
        mn = m * n
        mn_lane = _round_up(mn, _LANE)

        def linear_params(k, in_f, out_f):
            # Deterministic init mirroring torch.nn.Linear defaults:
            # U(-1/sqrt(in_f), 1/sqrt(in_f)) for both weight and bias.
            kw, kb = jax.random.split(k)
            bound = 1.0 / float(in_f) ** 0.5
            w = jax.random.uniform(kw, (out_f, in_f), jnp.float32, -bound, bound)
            b = jax.random.uniform(kb, (out_f,), jnp.float32, -bound, bound)
            return w, b

        if self.factored:
            ka, kb_ = jax.random.split(key)
            wa, ba = linear_params(ka, i, m * r)   # A: Linear(i, m*r); a[b,p,k] = row p*r+k
            wb, bb = linear_params(kb_, i, n * r)  # B: Linear(i, n*r); b[b,k,q] = row k*n+q
            self._wa_raw, self._ba_raw = wa, ba
            self._wb_raw, self._bb_raw = wb, bb
            # Host-side (one time) rank expansion so the kernel's MXU output lands
            # directly in (B, m*n)-aligned columns (lane-dense, no in-kernel XLU).
            self.mn_pad = mn_lane
            p_idx = jnp.repeat(jnp.arange(m), n)             # (mn,)
            q_idx = jnp.tile(jnp.arange(n), m)               # (mn,)
            k_idx = jnp.arange(r)
            a_rows = p_idx[None, :] * r + k_idx[:, None]     # (r, mn): wa row p*r + k
            b_rows = k_idx[:, None] * n + q_idx[None, :]     # (r, mn): wb row k*n + q
            pad = mn_lane - mn
            wa_sel = jnp.pad(wa[a_rows], ((0, 0), (0, pad), (0, 0)))   # (r, mn_pad, i)
            wb_sel = jnp.pad(wb[b_rows], ((0, 0), (0, pad), (0, 0)))
            ba_sel = jnp.pad(ba[a_rows], ((0, 0), (0, pad)))           # (r, mn_pad)
            bb_sel = jnp.pad(bb[b_rows], ((0, 0), (0, pad)))
            self.wa_exp = (wa_sel.transpose(2, 0, 1)
                           .reshape(i, r * mn_lane).astype(weight_dtype))
            self.wb_exp = (wb_sel.transpose(2, 0, 1)
                           .reshape(i, r * mn_lane).astype(weight_dtype))
            self.ba_exp = ba_sel.reshape(1, r * mn_lane).astype(jnp.float32)
            self.bb_exp = bb_sel.reshape(1, r * mn_lane).astype(jnp.float32)
            weight_bytes = 2 * i * r * mn_lane * wbytes + 2 * r * mn_lane * 4
            # TODO(synk): for very large r*m*n replace the expansion with the compact
            # W_cat matmul plus a column-tiled grid; until then fall back to XLA.
            self._pallas_ok = weight_bytes <= (budget * 3) // 4
        else:
            wm, bm = linear_params(key, i, m * n)  # M: Linear(i, m*n)
            self._wm_raw, self._bm_raw = wm, bm
            # Per-chip column tile: largest of {2048,1024,512,256,128} whose
            # double-buffered weight stream fits half the VMEM budget.
            tile_n = _LANE
            for cand in (2048, 1024, 512, 256):
                if cand <= mn_lane and 2 * i * cand * wbytes <= budget // 2:
                    tile_n = cand
                    break
            tile_n = min(tile_n, mn_lane)
            mn_pad = _round_up(mn_lane, tile_n)
            n_steps = mn_pad // tile_n
            # 3-deep weight pipeline only when several tiles are streamed and it fits.
            self.n_buf = 3 if (n_steps > 2 and
                               3 * i * tile_n * wbytes <= budget // 2) else 2
            self.tile_n = tile_n
            self.mn_pad = mn_pad
            self.wm = jnp.pad(wm.T, ((0, 0), (0, mn_pad - mn))).astype(weight_dtype)
            self.bm = jnp.pad(bm, (0, mn_pad - mn)).reshape(1, mn_pad).astype(jnp.float32)
            self._pallas_ok = True

        self._fast2d = jax.jit(self._reference_2d)   # plain-XLA fast path

    # ---- forward -----------------------------------------------------------
    def __call__(self, x):
        if x.ndim == 1:
            x2, squeeze = x[None, :], True
        elif x.ndim == 2:
            x2, squeeze = x, False
        else:
            raise AssertionError(
                "LowRank expects either a 1-dimensional or 2-dimensional tensor")
        B = x2.shape[0]
        B8 = max(_round_up(B, _SUBLANE), _SUBLANE)
        budget, _ = _vmem_budget_and_cap()
        wbytes = jnp.dtype(self.weight_dtype).itemsize

        use_pallas = self._pallas_ok
        if use_pallas and self.small_fast_path:
            work = B8 * max(self.m * self.n,
                            self.r * (self.m + self.n) if self.factored else 0)
            if work <= _XLA_FAST_PATH_WORK:
                use_pallas = False            # tiny problem: pure-XLA fusion wins
        if use_pallas and not self.factored:
            resident = B8 * self.i * wbytes + 2 * B8 * self.tile_n * 4
            stream = self.n_buf * self.i * self.tile_n * wbytes
            if resident + stream + self.mn_pad * 4 > budget:
                # TODO(synk): add batch / K grid axes for very large B or i instead
                # of falling back to XLA.
                use_pallas = False

        if not use_pallas:
            y = self._fast2d(x2)
        elif self.factored:
            y = _factored_forward(x2, self.wa_exp, self.wb_exp,
                                  self.ba_exp, self.bb_exp,
                                  m=self.m, n=self.n, r=self.r)
        else:
            try:
                y = _full_forward(x2, self.wm, self.bm, m=self.m, n=self.n,
                                  tile_n=self.tile_n, n_buf=self.n_buf)
            except Exception:
                if self.n_buf == 2:
                    raise
                # pl.Buffered(3) unsupported on this build -> default 2-deep pipeline.
                y = _full_forward(x2, self.wm, self.bm, m=self.m, n=self.n,
                                  tile_n=self.tile_n, n_buf=2)
        return y[0] if squeeze else y

    # ---- pure-JAX reference (PyTorch forward with the same weight dtype) ----
    def _reference_2d(self, x2):
        B = x2.shape[0]
        up = lambda a: a.astype(self.weight_dtype).astype(jnp.float32)
        xq = up(x2)
        if self.factored:
            a = (xq @ up(self._wa_raw).T + self._ba_raw).reshape(B, self.m, self.r)
            b = (xq @ up(self._wb_raw).T + self._bb_raw).reshape(B, self.r, self.n)
            return jnp.einsum("bmr,brn->bmn", a, b)
        return (xq @ up(self._wm_raw).T + self._bm_raw).reshape(B, self.m, self.n)

    def reference(self, x):
        if x.ndim == 1:
            return self._reference_2d(x[None, :])[0]
        return self._reference_2d(x)


# ---------------------------------------------------------------------------
if __name__ == "__main__":
    key = jax.random.PRNGKey(0)
    kf, km, kx, kxb = jax.random.split(key, 4)

    i_dim, m, n, r, batch = 32, 8, 16, 2, 2   # m*n = 128 -> one full lane width
    x = jax.random.normal(kx, (batch, i_dim), dtype=jnp.float32)
    x1d = x[0]

    # Factored (low-rank) path through the Pallas kernel.
    mod_f = LowRankPallas(kf, i_dim, m, n, r, small_fast_path=False)
    y_f = jax.block_until_ready(mod_f(x))
    assert y_f.shape == (batch, m, n)
    assert jnp.allclose(y_f, mod_f.reference(x), rtol=1e-2, atol=1e-2)

    # Factored path, 1-D input (needToSqueeze branch).
    y_f1 = jax.block_until_ready(mod_f(x1d))
    assert y_f1.shape == (m, n)
    assert jnp.allclose(y_f1, mod_f.reference(x1d), rtol=1e-2, atol=1e-2)

    # Full-rank path (r=None), single column tile.
    mod_m = LowRankPallas(km, i_dim, m, n, None, small_fast_path=False)
    y_m = jax.block_until_ready(mod_m(x))
    assert y_m.shape == (batch, m, n)
    assert jnp.allclose(y_m, mod_m.reference(x), rtol=1e-2, atol=1e-2)

    # Full-rank path, multi-tile column grid (streamed weights, in-kernel bias slice).
    m2, n2, batch2 = 64, 96, 4
    x_big = jax.random.normal(kxb, (batch2, i_dim), dtype=jnp.float32)
    mod_b = LowRankPallas(jax.random.fold_in(km, 1), i_dim, m2, n2, None,
                          small_fast_path=False)
    y_b = jax.block_until_ready(mod_b(x_big))
    assert y_b.shape == (batch2, m2, n2)
    assert jnp.allclose(y_b, mod_b.reference(x_big), rtol=1e-2, atol=1e-2)

    # Auto dispatch: tiny problems take the plain-XLA fast path.
    mod_auto = LowRankPallas(kf, i_dim, m, n, r)   # small_fast_path=True (default)
    y_a = jax.block_until_ready(mod_auto(x))
    assert jnp.allclose(y_a, mod_f.reference(x), rtol=1e-2, atol=1e-2)

    print("KERNEL_OK")
</pallas_src>

<mosaic_0001>
module attributes {stable_mosaic.version = 11 : i64} {
  func.func @_lowrank_factored_kernel(%arg0: i32, %arg1: memref<8x32xbf16, #tpu.memory_space<vmem>>, %arg2: memref<32x256xbf16, #tpu.memory_space<vmem>>, %arg3: memref<32x256xbf16, #tpu.memory_space<vmem>>, %arg4: memref<1x256xf32, #tpu.memory_space<vmem>>, %arg5: memref<1x256xf32, #tpu.memory_space<vmem>>, %arg6: memref<8x128xf32, #tpu.memory_space<vmem>>) attributes {dimension_semantics = [#tpu.dimension_semantics<parallel>], iteration_bounds = array<i64: 1>, scalar_prefetch = 0 : i64, scratch_operands = 0 : i64, tpu.core_type = #tpu.core_type<tc>, window_params = [{transform_indices = @transform_0, window_bounds = array<i64: 8, 32>}, {pipeline_mode = #tpu.pipeline_mode<synchronous>, transform_indices = @transform_1, window_bounds = array<i64: 32, 256>}, {pipeline_mode = #tpu.pipeline_mode<synchronous>, transform_indices = @transform_2, window_bounds = array<i64: 32, 256>}, {pipeline_mode = #tpu.pipeline_mode<synchronous>, transform_indices = @transform_3, window_bounds = array<i64: 1, 256>}, {pipeline_mode = #tpu.pipeline_mode<synchronous>, transform_indices = @transform_4, window_bounds = array<i64: 1, 256>}, {transform_indices = @transform_5, window_bounds = array<i64: 8, 128>}]} {
    %c0 = arith.constant 0 : index
    %c0_0 = arith.constant 0 : index
    %0 = vector.load %arg1[%c0, %c0_0] : memref<8x32xbf16, #tpu.memory_space<vmem>>, vector<8x32xbf16>
    %c0_1 = arith.constant 0 : index
    %c0_2 = arith.constant 0 : index
    %1 = vector.load %arg2[%c0_1, %c0_2] : memref<32x256xbf16, #tpu.memory_space<vmem>>, vector<32x256xbf16>
    %cst = arith.constant dense<0.000000e+00> : vector<8x256xf32>
    %2 = tpu.matmul %0, %1, %cst {dimension_numbers = #tpu.dot_dimension_numbers<[1], [0], [0], [1], [0, 0, 1, 1], [], []>} : vector<8x32xbf16>, vector<32x256xbf16>, vector<8x256xf32> -> vector<8x256xf32>
    %c0_3 = arith.constant 0 : index
    %c0_4 = arith.constant 0 : index
    %3 = vector.load %arg4[%c0_3, %c0_4] : memref<1x256xf32, #tpu.memory_space<vmem>>, vector<1x256xf32>
    %4 = vector.broadcast %3 : vector<1x256xf32> to vector<8x256xf32>
    %5 = arith.addf %2, %4 : vector<8x256xf32>
    %c0_5 = arith.constant 0 : index
    %c0_6 = arith.constant 0 : index
    %6 = vector.load %arg3[%c0_5, %c0_6] : memref<32x256xbf16, #tpu.memory_space<vmem>>, vector<32x256xbf16>
    %cst_7 = arith.constant dense<0.000000e+00> : vector<8x256xf32>
    %7 = tpu.matmul %0, %6, %cst_7 {dimension_numbers = #tpu.dot_dimension_numbers<[1], [0], [0], [1], [0, 0, 1, 1], [], []>} : vector<8x32xbf16>, vector<32x256xbf16>, vector<8x256xf32> -> vector<8x256xf32>
    %c0_8 = arith.constant 0 : index
    %c0_9 = arith.constant 0 : index
    %8 = vector.load %arg5[%c0_8, %c0_9] : memref<1x256xf32, #tpu.memory_space<vmem>>, vector<1x256xf32>
    %9 = vector.broadcast %8 : vector<1x256xf32> to vector<8x256xf32>
    %10 = arith.addf %7, %9 : vector<8x256xf32>
    %11 = arith.mulf %5, %10 : vector<8x256xf32>
    %12 = vector.extract_strided_slice %11 {offsets = [0, 0], sizes = [8, 128], strides = [1, 1]} : vector<8x256xf32> to vector<8x128xf32>
    %13 = vector.extract_strided_slice %11 {offsets = [0, 128], sizes = [8, 128], strides = [1, 1]} : vector<8x256xf32> to vector<8x128xf32>
    %14 = arith.addf %12, %13 : vector<8x128xf32>
    %c0_10 = arith.constant 0 : index
    %c0_11 = arith.constant 0 : index
    %15 = vector.load %arg6[%c0_10, %c0_11] : memref<8x128xf32, #tpu.memory_space<vmem>>, vector<8x128xf32>
    tpu.vector_store %arg6[%c0_10, %c0_11], %14 {strides = array<i32>} : memref<8x128xf32, #tpu.memory_space<vmem>>, vector<8x128xf32>,
    return
  }
  func.func @transform_0(%arg0: i32) -> (i32, i32) {
    %c0_i32 = arith.constant 0 : i32
    %c0_i32_0 = arith.constant 0 : i32
    return %arg0, %c0_i32 : i32, i32
  }
  func.func @transform_1(%arg0: i32) -> (i32, i32) {
    %c0_i32 = arith.constant 0 : i32
    %c0_i32_0 = arith.constant 0 : i32
    %c0_i32_1 = arith.constant 0 : i32
    return %c0_i32, %c0_i32_0 : i32, i32
  }
  func.func @transform_2(%arg0: i32) -> (i32, i32) {
    %c0_i32 = arith.constant 0 : i32
    %c0_i32_0 = arith.constant 0 : i32
    %c0_i32_1 = arith.constant 0 : i32
    return %c0_i32, %c0_i32_0 : i32, i32
  }
  func.func @transform_3(%arg0: i32) -> (i32, i32) {
    %c0_i32 = arith.constant 0 : i32
    %c0_i32_0 = arith.constant 0 : i32
    %c0_i32_1 = arith.constant 0 : i32
    return %c0_i32, %c0_i32_0 : i32, i32
  }
  func.func @transform_4(%arg0: i32) -> (i32, i32) {
    %c0_i32 = arith.constant 0 : i32
    %c0_i32_0 = arith.constant 0 : i32
    %c0_i32_1 = arith.constant 0 : i32
    return %c0_i32, %c0_i32_0 : i32, i32
  }
  func.func @transform_5(%arg0: i32) -> (i32, i32) {
    %c0_i32 = arith.constant 0 : i32
    %c0_i32_0 = arith.constant 0 : i32
    return %arg0, %c0_i32 : i32, i32
  }
}

</mosaic_0001>

<llo_original>
// kernel: _factored_forward.1
$region0: #{_factored_forward.1}
  #allocation0 [shape = 'u32[]', space=smem, size = 0x4, offset = 0x4, fixed_abs, tag = 'smem constant byte address 0x4 - core index']
  #allocation1 [shape = 'u32[144,128]{1,0:T(1,128)}', space=vmem, size = 0x12000, scoped, tag = 'internal scratch']
  %s0 = inlined_call_operand.vmem [shape: bf16[8,32], index: 0, kind: input, shape index: {}]
  %s1 = inlined_call_operand.hbm [shape: bf16[32,256], index: 1, kind: input, shape index: {}]
  %s2 = inlined_call_operand.hbm [shape: bf16[32,256], index: 2, kind: input, shape index: {}]
  %s3 = inlined_call_operand.vmem [shape: f32[1,256], index: 3, kind: input, shape index: {}]
  %s4 = inlined_call_operand.vmem [shape: f32[1,256], index: 4, kind: input, shape index: {}]
  %s5 = inlined_call_operand.vmem [shape: f32[8,128], index: 5, kind: output, shape index: {}]
  %s6 = sld [smem:[#allocation0]]
  $region38: #{_factored_forward.1} parent=0
    _
  %s8 = ssub.s32 1, %s6
  %s9 = scalar_select 0, %s8, %s6
  $region1: #{_factored_forward.1} parent=0
    #allocation2 [shape = 'u8[16384]{0}', space=vmem, size = 0x4000, scoped, tag = 'input window, operand 1, single buffered']
    #allocation3 [shape = 's32[1]{0}', space=sflag, size = 0x4, scoped, tag = 'scoped memory for _factored_forward.1']
    #allocation4 [shape = 'u8[16384]{0}', space=vmem, size = 0x4000, scoped, tag = 'input window, operand 2, single buffered']
    #allocation5 [shape = 's32[1]{0}', space=sflag, size = 0x4, scoped, tag = 'scoped memory for _factored_forward.1']
    %10 = vsyncpa [#allocation3], 0
    %11 = vsyncpa [#allocation5], 0
    // Predicated region
    $region2: #{_factored_forward.1} parent=1 // pred_check
      _
    $region3: #{_factored_forward.1} parent=1 // pred_check_branch
      %13 = sbr.rel (0) target = $region5
    $region4: #{_factored_forward.1} parent=1 // pred_region
      _
    $region5: #{_factored_forward.1} parent=1 // pred_fallthru
      _
    // Predicated region
    $region6: #{_factored_forward.1} parent=1 // pred_check
      _
    $region7: #{_factored_forward.1} parent=1 // pred_check_branch
      %15 = sbr.rel (0) target = $region9
    $region8: #{_factored_forward.1} parent=1 // pred_region
      %s17 = ssub.s32 512, 512
      %18 = vsyncadd [#allocation3], %s17
      %s19 = sshll.u32 [#allocation2], 4
      %s20 = int_to_ptr.vmem [resolvable:$true] %s19
      %25 = dma.hbm_to_vmem [thread:$0]  %s1, 512, %s20, [#allocation3], 128, 128, 8
    $region9: #{_factored_forward.1} parent=1 // pred_fallthru
      _
    // Predicated region
    $region10: #{_factored_forward.1} parent=1 // pred_check
      _
    $region11: #{_factored_forward.1} parent=1 // pred_check_branch
      %27 = sbr.rel (0) target = $region13
    $region12: #{_factored_forward.1} parent=1 // pred_region
      %s29 = ssub.s32 512, 512
      %30 = vsyncadd [#allocation5], %s29
      %s31 = sshll.u32 [#allocation4], 4
      %s32 = int_to_ptr.vmem [resolvable:$true] %s31
      %37 = dma.hbm_to_vmem [thread:$0]  %s2, 512, %s32, [#allocation5], 128, 128, 8
    $region13: #{_factored_forward.1} parent=1 // pred_fallthru
      _
    // Predicated region
    $region14: #{_factored_forward.1} parent=1 // pred_check
      _
    $region15: #{_factored_forward.1} parent=1 // pred_check_branch
      %39 = sbr.rel (0) target = $region17
    $region16: #{_factored_forward.1} parent=1 // pred_region
      _
    $region17: #{_factored_forward.1} parent=1 // pred_fallthru
      _
    // Predicated region
    $region18: #{_factored_forward.1} parent=1 // pred_check
      _
    $region19: #{_factored_forward.1} parent=1 // pred_check_branch
      %41 = sbr.rel (0) target = $region21
    $region20: #{_factored_forward.1} parent=1 // pred_region
      _
    $region21: #{_factored_forward.1} parent=1 // pred_fallthru
      _
    // Predicated region
    $region22: #{_factored_forward.1} parent=1 // pred_check
      _
    $region23: #{_factored_forward.1} parent=1 // pred_check_branch
      %43 = sbr.rel (0) target = $region25
    $region24: #{_factored_forward.1} parent=1 // pred_region
      %44 = dma.done [#allocation3], 512
    $region25: #{_factored_forward.1} parent=1 // pred_fallthru
      _
    // Predicated region
    $region26: #{_factored_forward.1} parent=1 // pred_check
      _
    $region27: #{_factored_forward.1} parent=1 // pred_check_branch
      %46 = sbr.rel (0) target = $region29
    $region28: #{_factored_forward.1} parent=1 // pred_region
      %47 = dma.done [#allocation5], 512
    $region29: #{_factored_forward.1} parent=1 // pred_fallthru
      _
    %v49 = vld [vmem:[%s0] sm:$0xf]
    %v50 = vld [vmem:[#allocation2] sm:$0xff]
    %v51 = vld [vmem:[#allocation2 + $0x8] sm:$0xff]
    %v52 = vld [vmem:[#allocation2 + $0x10] sm:$0xff]
    %v53 = vld [vmem:[#allocation2 + $0x18] sm:$0xff]
    %v54 = vld [vmem:[%s3] sm:$0x3]
    %v56 = vlaneseq
    %v57 = vshrl.u32 %v56, 7
    %v58 = vsub.s32 0, %v57
    %v59 = vrot.slane %v54, %v58
    %v60 = vlaneseq
    %v61 = vshrl.u32 %v60, 7
    %v62 = vsub.s32 1, %v61
    %v63 = vrot.slane %v54, %v62
    %v70 = vunpack.c.l.b16 %v50
    %v71 = vunpack.c.h.b16 %v50
    %v72 = vunpack.c.l.b16 %v51
    %v73 = vunpack.c.h.b16 %v51
    %v74 = vunpack.c.l.b16 %v52
    %v75 = vunpack.c.h.b16 %v52
    %v76 = vunpack.c.l.b16 %v53
    %v77 = vunpack.c.h.b16 %v53
    %v78 = vpack.c.b16 %v72, %v70
    %v79 = vpack.c.b16 %v73, %v71
    %v80 = vpack.c.b16 %v76, %v74
    %v81 = vpack.c.b16 %v77, %v75
    %vm86 = vcmask 261120
    %v88 = vsel %vm86, %v49, 0
    %90 = vmatprep.subr.bf16.mxu0 %v79
    %91 = vmatpush1.bf16.msra.mxu0 %v78
    %92 = vmatprep.subr.bf16.mxu0 %v81
    %93 = vmatpush1.bf16.msra.mxu0 %v80
    %94 = vmatprep.subr.bf16.mxu0 0
    %95 = vmatpush1.bf16.msra.mxu0 0
    %96 = vmatprep.subr.bf16.mxu0 0
    %97 = vmatpush1.bf16.msra.mxu0 0
    %98 = vmatprep.subr.bf16.mxu0 0
    %99 = vmatpush1.bf16.msra.mxu0 0
    %100 = vmatprep.subr.bf16.mxu0 0
    %101 = vmatpush1.bf16.msra.mxu0 0
    %102 = vmatprep.subr.bf16.mxu0 0
    %103 = vmatpush1.bf16.msra.mxu0 0
    %104 = vmatprep.subr.bf16.mxu0 0
    %105 = vmatpush1.bf16.msra.mxu0 0
    %106 = vmatprep.subr.bf16.mxu0 0
    %107 = vmatpush1.bf16.msra.mxu0 0
    %108 = vmatprep.subr.bf16.mxu0 0
    %109 = vmatpush1.bf16.msra.mxu0 0
    %110 = vmatprep.subr.bf16.mxu0 0
    %111 = vmatpush1.bf16.msra.mxu0 0
    %112 = vmatprep.subr.bf16.mxu0 0
    %113 = vmatpush1.bf16.msra.mxu0 0
    %114 = vmatprep.subr.bf16.mxu0 0
    %115 = vmatpush1.bf16.msra.mxu0 0
    %116 = vmatprep.subr.bf16.mxu0 0
    %117 = vmatpush1.bf16.msra.mxu0 0
    %118 = vmatprep.subr.bf16.mxu0 0
    %119 = vmatpush1.bf16.msra.mxu0 0
    %120 = vmatprep.subr.bf16.mxu0 0
    %121 = vmatpush1.bf16.msra.mxu0 0
    %122 = vmatprep.mubr.bf16.mxu0 0
    %123 = vmatmul.mubr.bf16.gmra.mrb[0].mxu0 %v88
    %v124 = vpop.f32.mrb[0].mxu0
    %v125 = vadd.f32 %v59, %v124
    %v126 = vpop.f32.mrb[0].mxu0
    %v127 = vadd.f32 %v63, %v126
    %v128 = vpop.f32.mrb[0].mxu0
    %v129 = vpop.f32.mrb[0].mxu0
    %130 = vdwg.mxu0
    %v131 = vld [vmem:[#allocation4] sm:$0xff]
    %v132 = vld [vmem:[#allocation4 + $0x8] sm:$0xff]
    %v133 = vld [vmem:[#allocation4 + $0x10] sm:$0xff]
    %v134 = vld [vmem:[#allocation4 + $0x18] sm:$0xff]
    %v135 = vld [vmem:[%s4] sm:$0x3]
    %v137 = vlaneseq
    %v138 = vshrl.u32 %v137, 7
    %v139 = vsub.s32 0, %v138
    %v140 = vrot.slane %v135, %v139
    %v141 = vlaneseq
    %v142 = vshrl.u32 %v141, 7
    %v143 = vsub.s32 1, %v142
    %v144 = vrot.slane %v135, %v143
    %v151 = vunpack.c.l.b16 %v131
    %v152 = vunpack.c.h.b16 %v131
    %v153 = vunpack.c.l.b16 %v132
    %v154 = vunpack.c.h.b16 %v132
    %v155 = vunpack.c.l.b16 %v133
    %v156 = vunpack.c.h.b16 %v133
    %v157 = vunpack.c.l.b16 %v134
    %v158 = vunpack.c.h.b16 %v134
    %v159 = vpack.c.b16 %v153, %v151
    %v160 = vpack.c.b16 %v154, %v152
    %v161 = vpack.c.b16 %v157, %v155
    %v162 = vpack.c.b16 %v158, %v156
    %167 = vmatprep.subr.bf16.mxu0 %v160
    %168 = vmatpush1.bf16.msra.mxu0 %v159
    %169 = vmatprep.subr.bf16.mxu0 %v162
    %170 = vmatpush1.bf16.msra.mxu0 %v161
    %171 = vmatprep.subr.bf16.mxu0 0
    %172 = vmatpush1.bf16.msra.mxu0 0
    %173 = vmatprep.subr.bf16.mxu0 0
    %174 = vmatpush1.bf16.msra.mxu0 0
    %175 = vmatprep.subr.bf16.mxu0 0
    %176 = vmatpush1.bf16.msra.mxu0 0
    %177 = vmatprep.subr.bf16.mxu0 0
    %178 = vmatpush1.bf16.msra.mxu0 0
    %179 = vmatprep.subr.bf16.mxu0 0
    %180 = vmatpush1.bf16.msra.mxu0 0
    %181 = vmatprep.subr.bf16.mxu0 0
    %182 = vmatpush1.bf16.msra.mxu0 0
    %183 = vmatprep.subr.bf16.mxu0 0
    %184 = vmatpush1.bf16.msra.mxu0 0
    %185 = vmatprep.subr.bf16.mxu0 0
    %186 = vmatpush1.bf16.msra.mxu0 0
    %187 = vmatprep.subr.bf16.mxu0 0
    %188 = vmatpush1.bf16.msra.mxu0 0
    %189 = vmatprep.subr.bf16.mxu0 0
    %190 = vmatpush1.bf16.msra.mxu0 0
    %191 = vmatprep.subr.bf16.mxu0 0
    %192 = vmatpush1.bf16.msra.mxu0 0
    %193 = vmatprep.subr.bf16.mxu0 0
    %194 = vmatpush1.bf16.msra.mxu0 0
    %195 = vmatprep.subr.bf16.mxu0 0
    %196 = vmatpush1.bf16.msra.mxu0 0
    %197 = vmatprep.subr.bf16.mxu0 0
    %198 = vmatpush1.bf16.msra.mxu0 0
    %199 = vmatprep.mubr.bf16.mxu0 0
    %200 = vmatmul.mubr.bf16.gmra.mrb[0].mxu0 %v88
    %v201 = vpop.f32.mrb[0].mxu0
    %v202 = vadd.f32 %v140, %v201
    %v203 = vpop.f32.mrb[0].mxu0
    %v204 = vadd.f32 %v144, %v203
    %v205 = vpop.f32.mrb[0].mxu0
    %v206 = vpop.f32.mrb[0].mxu0
    %207 = vdwg.mxu0
    %v208 = vmul.f32 %v125, %v202
    %v209 = vmul.f32 %v127, %v204
    %v210 = vadd.f32 %v208, %v209
    %211 = vst [vmem:[%s5] sm:$0xff] %v210
    // Predicated region
    $region30: #{_factored_forward.1} parent=1 // pred_check
      _
    $region31: #{_factored_forward.1} parent=1 // pred_check_branch
      %213 = sbr.rel (0) target = $region33
    $region32: #{_factored_forward.1} parent=1 // pred_region
      _
    $region33: #{_factored_forward.1} parent=1 // pred_fallthru
      _
    // Predicated region
    $region34: #{_factored_forward.1} parent=1 // pred_check
      _
    $region35: #{_factored_forward.1} parent=1 // pred_check_branch
      %215 = sbr.rel (0) target = $region37
    $region36: #{_factored_forward.1} parent=1 // pred_region
      _
    $region37: #{_factored_forward.1} parent=1 // pred_fallthru
      _
    %216 = vsyncpa [#allocation3], 1
    %217 = vsyncpa [#allocation5], 1

</llo_original>
